<compile_context>
chip_gen: v6e
topology: v6e:2x2x1
jax: 0.10.0
libtpu: 0.0.40
codegen_flags: <defaults>
</compile_context>

<pallas_src>
import functools

import jax
import jax.numpy as jnp
from jax.experimental import pallas as pl
from jax.experimental.pallas import tpu as pltpu


def _round_up(x, m):
    return ((x + m - 1) // m) * m


def _acosh(u):
    # acosh(u) = log(u + sqrt(u^2 - 1)); clamp guards tiny fp negatives.
    return jnp.log(u + jnp.sqrt(jnp.maximum(u * u - 1.0, 0.0)))


def _hyp_ahd_kernel(x_ref, yt2_ref, xf_ref, yf_ref, rowmin_ref, colmin_ref):
    j = pl.program_id(1)

    x = x_ref[...]                       # (tn, d)    f32
    yt2 = yt2_ref[...]                   # (d, tm)    == 2 * y^T
    xn = xf_ref[:, 0:1]                  # (tn, 1)    |x|^2     (1e30 on pad rows)
    a = xf_ref[:, 1:2]                   # (tn, 1)    2/(1-|x|^2)  (1 on pad rows)
    yn = yf_ref[0:1, :]                  # (1, tm)    |y|^2     (1e30 on pad cols)
    b = yf_ref[1:2, :]                   # (1, tm)    1/(1-|y|^2)  (1 on pad cols)

    # Gram-trick pairwise term on the MXU, K = d (no (N,M,d) intermediate).
    g2 = jnp.dot(x, yt2, preferred_element_type=jnp.float32)    # (tn, tm) = 2*x.y

    # s = u - (1 + eps);  min over s == min over u (monotone shift).
    s = (xn + yn - g2) * a * b                                   # (tn, tm)

    # Running row minima across the (last / reduction) j axis, accumulated
    # directly in the resident output block.
    tile_row_min = jnp.min(s, axis=1, keepdims=True)             # (tn, 1)

    @pl.when(j == 0)
    def _():
        rowmin_ref[...] = tile_row_min

    @pl.when(j > 0)
    def _():
        rowmin_ref[...] = jnp.minimum(rowmin_ref[...], tile_row_min)

    # Per-(i, j) partial column minima; cross-i min happens outside the kernel.
    colmin_ref[...] = jnp.min(s, axis=0, keepdims=True)[None]    # (1, 1, tm)


def hyp_averaged_hausdorff_loss(set1, set2, *, directed=False, epsilon=0.0,
                                tile_n=256, tile_m=128):
    assert set1.ndim == 2, f"got {set1.ndim}"
    assert set2.ndim == 2, f"got {set2.ndim}"
    assert set1.shape[1] == set2.shape[1], (
        "The points in both sets must have the same number of dimensions, "
        f"got {set1.shape[1]} and {set2.shape[1]}."
    )
    n, d = set1.shape
    m, _ = set2.shape

    # Row tiles need sublane (8) alignment; column tiles need lane (128)
    # alignment.  The feature dim d is NOT padded.
    tn = min(_round_up(int(tile_n), 8), _round_up(n, 8))
    tm = min(_round_up(int(tile_m), 128), _round_up(m, 128))
    n_pad = _round_up(n, tn)
    m_pad = _round_up(m, tm)
    num_i = n_pad // tn
    num_j = m_pad // tm

    BIG = 1e30  # sentinel norm for padded points: s >= ~1e30 >> any real s.

    x = set1.astype(jnp.float32)
    y = set2.astype(jnp.float32)

    xn = jnp.sum(x * x, axis=1, keepdims=True)        # (n, 1)
    a = 2.0 / (1.0 - xn)
    yn = jnp.sum(y * y, axis=1, keepdims=True).T       # (1, m)
    b = 1.0 / (1.0 - yn)

    # Pad only the point-count dims.  Padded coordinates are zero (gram term
    # vanishes); padded factors are (BIG, 1) so padded pairs never win a min.
    x_p = jnp.pad(x, ((0, n_pad - n), (0, 0)))
    yt2_p = jnp.pad((2.0 * y).T, ((0, 0), (0, m_pad - m)))
    xf = jnp.concatenate(
        [jnp.pad(xn, ((0, n_pad - n), (0, 0)), constant_values=BIG),
         jnp.pad(a, ((0, n_pad - n), (0, 0)), constant_values=1.0)], axis=1)
    yf = jnp.concatenate(
        [jnp.pad(yn, ((0, 0), (0, m_pad - m)), constant_values=BIG),
         jnp.pad(b, ((0, 0), (0, m_pad - m)), constant_values=1.0)], axis=0)

    cost = pl.CostEstimate(
        flops=2 * n_pad * m_pad * d + 5 * n_pad * m_pad,
        transcendentals=0,
        bytes_accessed=4 * (n_pad * (d + 2) + num_i * m_pad * (d + 2)
                            + n_pad + num_i * m_pad),
    )

    rowmin, colmin = pl.pallas_call(
        _hyp_ahd_kernel,
        out_shape=(jax.ShapeDtypeStruct((n_pad, 1), jnp.float32),
                   jax.ShapeDtypeStruct((num_i, 1, m_pad), jnp.float32)),
        grid_spec=pltpu.PrefetchScalarGridSpec(
            num_scalar_prefetch=0,
            grid=(num_i, num_j),                    # j (columns) is the reduction axis
            in_specs=[
                pl.BlockSpec((tn, d), lambda i, j: (i, 0)),    # x rows
                pl.BlockSpec((d, tm), lambda i, j: (0, j)),    # 2*y^T columns
                pl.BlockSpec((tn, 2), lambda i, j: (i, 0)),    # [xn, a]
                pl.BlockSpec((2, tm), lambda i, j: (0, j)),    # [yn; b]
            ],
            out_specs=[
                pl.BlockSpec((tn, 1), lambda i, j: (i, 0)),        # row-min accumulator
                pl.BlockSpec((1, 1, tm), lambda i, j: (i, 0, j)),  # col-min partials
            ],
        ),
        compiler_params=pltpu.CompilerParams(
            dimension_semantics=("parallel", "arbitrary")),
        cost_estimate=cost,
    )(x_p, yt2_p, xf, yf)

    # Tiny O(N + num_i*M) epilogue in plain JAX: undo the -(1+eps) shift,
    # apply acosh only on the surviving minima, take the means.
    shift = jnp.float32(1.0 + float(epsilon))
    term_1 = jnp.mean(_acosh(rowmin[:n, 0] + shift))
    if directed:
        return term_1
    col_min = jnp.min(colmin[:, 0, :m], axis=0)
    term_2 = jnp.mean(_acosh(col_min + shift))
    return term_1 + term_2


def _reference(set1, set2, directed=False, epsilon=0.0):
    # Plain-JAX reference mirroring the PyTorch code (exact broadcasted diff).
    x = set1.astype(jnp.float32)
    y = set2.astype(jnp.float32)
    diff = x[:, None, :] - y[None, :, :]
    sqdist = jnp.sum(diff ** 2, axis=-1)
    x_norm = jnp.sum(x ** 2, axis=1).reshape(-1, 1)
    y_norm = jnp.sum(y ** 2, axis=1)
    u = 1.0 + 2.0 * sqdist / ((1.0 - x_norm) * (1.0 - y_norm)) + epsilon
    v = jnp.sqrt(u ** 2 - 1.0)
    dmat = jnp.log(u + v)
    t1 = jnp.mean(jnp.min(dmat, axis=1))
    t2 = jnp.mean(jnp.min(dmat, axis=0))
    return t1 if directed else t1 + t2


if __name__ == "__main__":
    key = jax.random.PRNGKey(0)
    k1, k2, k3, k4 = jax.random.split(key, 4)

    # Multi-tile path: padding + cross-tile min accumulation in both axes.
    N1, M1, D1 = 200, 300, 5
    s1 = jax.random.uniform(k1, (N1, D1), jnp.float32, minval=-0.3, maxval=0.3)
    s2 = jax.random.uniform(k2, (M1, D1), jnp.float32, minval=-0.3, maxval=0.3)
    loss = jax.block_until_ready(
        hyp_averaged_hausdorff_loss(s1, s2, directed=False, tile_n=64, tile_m=128))
    ref = _reference(s1, s2, directed=False)
    assert jnp.allclose(loss, ref, rtol=1e-4, atol=1e-4), (loss, ref)

    # Small single-tile path with default tiles, undirected and directed.
    N2, M2, D2 = 50, 37, 5
    s3 = jax.random.uniform(k3, (N2, D2), jnp.float32, minval=-0.3, maxval=0.3)
    s4 = jax.random.uniform(k4, (M2, D2), jnp.float32, minval=-0.3, maxval=0.3)
    loss_u = jax.block_until_ready(hyp_averaged_hausdorff_loss(s3, s4))
    ref_u = _reference(s3, s4)
    assert jnp.allclose(loss_u, ref_u, rtol=1e-4, atol=1e-4), (loss_u, ref_u)

    loss_d = jax.block_until_ready(
        hyp_averaged_hausdorff_loss(s3, s4, directed=True))
    ref_d = _reference(s3, s4, directed=True)
    assert jnp.allclose(loss_d, ref_d, rtol=1e-4, atol=1e-4), (loss_d, ref_d)

    print("KERNEL_OK")
</pallas_src>

<mosaic_0001>
module attributes {stable_mosaic.version = 11 : i64} {
  func.func @_hyp_ahd_kernel(%arg0: i32, %arg1: i32, %arg2: memref<64x5xf32, #tpu.memory_space<vmem>>, %arg3: memref<5x128xf32, #tpu.memory_space<vmem>>, %arg4: memref<64x2xf32, #tpu.memory_space<vmem>>, %arg5: memref<2x128xf32, #tpu.memory_space<vmem>>, %arg6: memref<64x1xf32, #tpu.memory_space<vmem>>, %arg7: memref<1x1x128xf32, #tpu.memory_space<vmem>>) attributes {dimension_semantics = [#tpu.dimension_semantics<parallel>, #tpu.dimension_semantics<arbitrary>], iteration_bounds = array<i64: 4, 3>, scalar_prefetch = 0 : i64, scratch_operands = 0 : i64, tpu.core_type = #tpu.core_type<tc>, window_params = [{transform_indices = @transform_0, window_bounds = array<i64: 64, 5>}, {transform_indices = @transform_1, window_bounds = array<i64: 5, 128>}, {transform_indices = @transform_2, window_bounds = array<i64: 64, 2>}, {transform_indices = @transform_3, window_bounds = array<i64: 2, 128>}, {transform_indices = @transform_4, window_bounds = array<i64: 64, 1>}, {transform_indices = @transform_5, window_bounds = array<i64: 1, 1, 128>}]} {
    %c0 = arith.constant 0 : index
    %c0_0 = arith.constant 0 : index
    %0 = vector.load %arg2[%c0, %c0_0] : memref<64x5xf32, #tpu.memory_space<vmem>>, vector<64x5xf32>
    %c0_1 = arith.constant 0 : index
    %c0_2 = arith.constant 0 : index
    %1 = vector.load %arg3[%c0_1, %c0_2] : memref<5x128xf32, #tpu.memory_space<vmem>>, vector<5x128xf32>
    %c0_3 = arith.constant 0 : index
    %c0_4 = arith.constant 0 : index
    %2 = vector.load %arg4[%c0_3, %c0_4] : memref<64x2xf32, #tpu.memory_space<vmem>>, vector<64x1xf32>
    %c0_5 = arith.constant 0 : index
    %c1 = arith.constant 1 : index
    %3 = vector.load %arg4[%c0_5, %c1] : memref<64x2xf32, #tpu.memory_space<vmem>>, vector<64x1xf32>
    %c0_6 = arith.constant 0 : index
    %c0_7 = arith.constant 0 : index
    %4 = vector.load %arg5[%c0_6, %c0_7] : memref<2x128xf32, #tpu.memory_space<vmem>>, vector<1x128xf32>
    %c1_8 = arith.constant 1 : index
    %c0_9 = arith.constant 0 : index
    %5 = vector.load %arg5[%c1_8, %c0_9] : memref<2x128xf32, #tpu.memory_space<vmem>>, vector<1x128xf32>
    %cst = arith.constant dense<0.000000e+00> : vector<64x128xf32>
    %6 = tpu.matmul %0, %1, %cst {dimension_numbers = #tpu.dot_dimension_numbers<[1], [0], [0], [1], [0, 0, 1, 1], [], []>} : vector<64x5xf32>, vector<5x128xf32>, vector<64x128xf32> -> vector<64x128xf32>
    %7 = vector.broadcast %2 : vector<64x1xf32> to vector<64x128xf32>
    %8 = vector.broadcast %4 : vector<1x128xf32> to vector<64x128xf32>
    %9 = arith.addf %7, %8 : vector<64x128xf32>
    %10 = arith.subf %9, %6 : vector<64x128xf32>
    %11 = vector.broadcast %3 : vector<64x1xf32> to vector<64x128xf32>
    %12 = arith.mulf %10, %11 : vector<64x128xf32>
    %13 = vector.broadcast %5 : vector<1x128xf32> to vector<64x128xf32>
    %14 = arith.mulf %12, %13 : vector<64x128xf32>
    %cst_10 = arith.constant dense<0x7F800000> : vector<64xf32>
    %15 = vector.multi_reduction <minimumf>, %14, %cst_10 [1] : vector<64x128xf32> to vector<64xf32>
    %16 = vector.shape_cast %15 : vector<64xf32> to vector<64x1xf32>
    %c0_i32 = arith.constant 0 : i32
    %17 = arith.cmpi eq, %arg1, %c0_i32 : i32
    %18 = arith.extui %17 : i1 to i32
    %c0_i32_11 = arith.constant 0 : i32
    %19 = arith.cmpi ne, %18, %c0_i32_11 : i32
    scf.if %19 {
      %c0_18 = arith.constant 0 : index
      %c0_19 = arith.constant 0 : index
      %27 = vector.load %arg6[%c0_18, %c0_19] : memref<64x1xf32, #tpu.memory_space<vmem>>, vector<64x1xf32>
      tpu.vector_store %arg6[%c0_18, %c0_19], %16 {strides = array<i32>} : memref<64x1xf32, #tpu.memory_space<vmem>>, vector<64x1xf32>,
    } else {
    }
    %c0_i32_12 = arith.constant 0 : i32
    %20 = arith.cmpi sgt, %arg1, %c0_i32_12 : i32
    %21 = arith.extui %20 : i1 to i32
    %c0_i32_13 = arith.constant 0 : i32
    %22 = arith.cmpi ne, %21, %c0_i32_13 : i32
    scf.if %22 {
      %c0_18 = arith.constant 0 : index
      %c0_19 = arith.constant 0 : index
      %27 = vector.load %arg6[%c0_18, %c0_19] : memref<64x1xf32, #tpu.memory_space<vmem>>, vector<64x1xf32>
      %28 = arith.minimumf %27, %16 : vector<64x1xf32>
      %c0_20 = arith.constant 0 : index
      %c0_21 = arith.constant 0 : index
      %29 = vector.load %arg6[%c0_20, %c0_21] : memref<64x1xf32, #tpu.memory_space<vmem>>, vector<64x1xf32>
      tpu.vector_store %arg6[%c0_20, %c0_21], %28 {strides = array<i32>} : memref<64x1xf32, #tpu.memory_space<vmem>>, vector<64x1xf32>,
    } else {
    }
    %cst_14 = arith.constant dense<0x7F800000> : vector<128xf32>
    %23 = vector.multi_reduction <minimumf>, %14, %cst_14 [0] : vector<64x128xf32> to vector<128xf32>
    %24 = vector.shape_cast %23 : vector<128xf32> to vector<1x128xf32>
    %25 = vector.shape_cast %24 : vector<1x128xf32> to vector<1x1x128xf32>
    %c0_15 = arith.constant 0 : index
    %c0_16 = arith.constant 0 : index
    %c0_17 = arith.constant 0 : index
    %26 = vector.load %arg7[%c0_15, %c0_16, %c0_17] : memref<1x1x128xf32, #tpu.memory_space<vmem>>, vector<1x1x128xf32>
    tpu.vector_store %arg7[%c0_15, %c0_16, %c0_17], %25 {strides = array<i32>} : memref<1x1x128xf32, #tpu.memory_space<vmem>>, vector<1x1x128xf32>,
    return
  }
  func.func @transform_0(%arg0: i32, %arg1: i32) -> (i32, i32) {
    %c0_i32 = arith.constant 0 : i32
    %c0_i32_0 = arith.constant 0 : i32
    return %arg0, %c0_i32 : i32, i32
  }
  func.func @transform_1(%arg0: i32, %arg1: i32) -> (i32, i32) {
    %c0_i32 = arith.constant 0 : i32
    %c0_i32_0 = arith.constant 0 : i32
    return %c0_i32, %arg1 : i32, i32
  }
  func.func @transform_2(%arg0: i32, %arg1: i32) -> (i32, i32) {
    %c0_i32 = arith.constant 0 : i32
    %c0_i32_0 = arith.constant 0 : i32
    return %arg0, %c0_i32 : i32, i32
  }
  func.func @transform_3(%arg0: i32, %arg1: i32) -> (i32, i32) {
    %c0_i32 = arith.constant 0 : i32
    %c0_i32_0 = arith.constant 0 : i32
    return %c0_i32, %arg1 : i32, i32
  }
  func.func @transform_4(%arg0: i32, %arg1: i32) -> (i32, i32) {
    %c0_i32 = arith.constant 0 : i32
    %c0_i32_0 = arith.constant 0 : i32
    return %arg0, %c0_i32 : i32, i32
  }
  func.func @transform_5(%arg0: i32, %arg1: i32) -> (i32, i32, i32) {
    %c0_i32 = arith.constant 0 : i32
    %c0_i32_0 = arith.constant 0 : i32
    return %arg0, %c0_i32, %arg1 : i32, i32, i32
  }
}

</mosaic_0001>

<llo_original>
// kernel: tpu_custom_call.1
$region0: #{tpu_custom_call.1}
  #allocation0 [shape = 'u32[]', space=smem, size = 0x4, offset = 0x4, fixed_abs, tag = 'smem constant byte address 0x4 - core index']
  #allocation1 [shape = 'u32[144,128]{1,0:T(1,128)}', space=vmem, size = 0x12000, scoped, tag = 'internal scratch']
  %s0 = inlined_call_operand.vmem [shape: f32[256,5], index: 0, kind: input, shape index: {}]
  %s1 = inlined_call_operand.vmem [shape: f32[5,384], index: 1, kind: input, shape index: {}]
  %s2 = inlined_call_operand.vmem [shape: f32[256,2], index: 2, kind: input, shape index: {}]
  %s3 = inlined_call_operand.vmem [shape: f32[2,384], index: 3, kind: input, shape index: {}]
  %s4 = inlined_call_operand.vmem [shape: f32[256,1], index: 4, kind: output, shape index: {0}]
  %s5 = inlined_call_operand.hbm [shape: f32[4,1,384], index: 5, kind: output, shape index: {1}]
  %6 = xla_tuple %s4, %s5
  %s7 = sld [smem:[#allocation0]]
  $region65: #{tpu_custom_call.1} parent=0
    _
  %s9 = ssub.s32 1, %s7
  %s10 = scalar_select 0, %s9, %s7
  $region1: #{tpu_custom_call.1} parent=0
    #allocation2 [shape = 'u8[1024]{0}', space=vmem, size = 0x400, scoped, tag = 'output window, operand 1']
    #allocation3 [shape = 's32[2]{0}', space=sflag, size = 0x8, scoped, tag = 'scoped memory for tpu_custom_call.1']
    %11 = vsyncpa [#allocation3], 0
    %s12 = scalar_lea.sflag [#allocation3], 1
    %13 = vsyncpa %s12, 0
    loop: start=0, step=1, limit=14
    $region2: #{tpu_custom_call.1} parent=1 // loop_pre_header
      _
    $region3: #{tpu_custom_call.1} parent=1 // loop_header
      %s15 = sphi 0, %s19
      %p16 = scmp.ge.s32.totalorder %s15, 14
      %s22 = sphi 0, %s34
      %s23 = sphi 0, %s30
      %s24 = sphi 0, %s22
      %s25 = sphi 0, %s23
      %s26 = sphi 0, %s24
      %s27 = sphi 0, %s25
      %s37 = sphi 0, %s39
      %s40 = sphi 0, %s37
      %s41 = sphi 0, %s40
      %s57 = sphi 0, %s41
      %s63 = sphi 0, %s65
      %s66 = sphi 0, %s63
      %s67 = sphi 0, %s66
      %s83 = sphi 0, %s67
      %s89 = sphi 0, %s91
      %s92 = sphi 0, %s89
      %s93 = sphi 0, %s92
      %s109 = sphi 0, %s93
      %s115 = sphi 0, %s117
      %s118 = sphi 0, %s115
      %s119 = sphi 0, %s118
      %s135 = sphi 0, %s119
      %s141 = sphi 0, %s143
      %s144 = sphi 0, %s141
      %s145 = sphi 0, %s144
      %s161 = sphi 0, %s145
      %s169 = sphi 0, %s171
      %s172 = sphi 0, %s169
      %s173 = sphi 0, %s172
      %s189 = sphi 0, %s173
    $region4: #{tpu_custom_call.1} parent=1 // loop_header_branch
      %18 = sbr.rel (%p16) target = $region8
    $region5: #{tpu_custom_call.1} parent=1 // loop_body
      %s20 = ssub.s32 %s15, 1
      %s21 = ssub.s32 %s15, 2
      %s28 = sadd.s32 1, %s23
      %p29 = scmp.ge.s32.totalorder %s28, 3
      %s30 = scalar_select %p29, 0, %s28
      %s31 = sadd.s32 1, %s22
      %s32 = scalar_select %p29, %s31, %s22
      %p33 = scmp.ge.s32.totalorder %s32, 4
      %s34 = scalar_select %p33, 0, %s32
      %s35 = ssub.s32 %s22, %s34
      %p36 = scmp.eq.s32.totalorder %s35, 0
      %s38 = sadd.s32 %s37, 1
      %s39 = scalar_select %p36, %s37, %s38
      %p42 = pneg %p36
      %p43 = scmp.eq.s32.totalorder %s15, 11
      %p44 = por %p42, %p43
      %p45 = scmp.ne.s32.totalorder %s37, %s40
      %p46 = scmp.eq.s32.totalorder %s15, 0
      %p47 = por %p45, %p46
      %p48 = scmp.ne.s32.totalorder %s37, %s40
      %p49 = scmp.eq.s32.totalorder %s20, 11
      %p50 = por %p48, %p49
      %p51 = scmp.ne.s32.totalorder %s40, %s41
      %p52 = scmp.eq.s32.totalorder %s20, 0
      %p53 = por %p51, %p52
      %p54 = scmp.ne.s32.totalorder %s40, %s41
      %p55 = scmp.eq.s32.totalorder %s21, 11
      %p56 = por %p54, %p55
      %p58 = scmp.ne.s32.totalorder %s41, %s57
      %p59 = scmp.eq.s32.totalorder %s21, 0
      %p60 = por %p58, %p59
      %s61 = ssub.s32 %s23, %s30
      %p62 = scmp.eq.s32.totalorder %s61, 0
      %s64 = sadd.s32 %s63, 1
      %s65 = scalar_select %p62, %s63, %s64
      %p68 = pneg %p62
      %p69 = scmp.eq.s32.totalorder %s15, 11
      %p70 = por %p68, %p69
      %p71 = scmp.ne.s32.totalorder %s63, %s66
      %p72 = scmp.eq.s32.totalorder %s15, 0
      %p73 = por %p71, %p72
      %p74 = scmp.ne.s32.totalorder %s63, %s66
      %p75 = scmp.eq.s32.totalorder %s20, 11
      %p76 = por %p74, %p75
      %p77 = scmp.ne.s32.totalorder %s66, %s67
      %p78 = scmp.eq.s32.totalorder %s20, 0
      %p79 = por %p77, %p78
      %p80 = scmp.ne.s32.totalorder %s66, %s67
      %p81 = scmp.eq.s32.totalorder %s21, 11
      %p82 = por %p80, %p81
      %p84 = scmp.ne.s32.totalorder %s67, %s83
      %p85 = scmp.eq.s32.totalorder %s21, 0
      %p86 = por %p84, %p85
      %s87 = ssub.s32 %s22, %s34
      %p88 = scmp.eq.s32.totalorder %s87, 0
      %s90 = sadd.s32 %s89, 1
      %s91 = scalar_select %p88, %s89, %s90
      %p94 = pneg %p88
      %p95 = scmp.eq.s32.totalorder %s15, 11
      %p96 = por %p94, %p95
      %p97 = scmp.ne.s32.totalorder %s89, %s92
      %p98 = scmp.eq.s32.totalorder %s15, 0
      %p99 = por %p97, %p98
      %p100 = scmp.ne.s32.totalorder %s89, %s92
      %p101 = scmp.eq.s32.totalorder %s20, 11
      %p102 = por %p100, %p101
      %p103 = scmp.ne.s32.totalorder %s92, %s93
      %p104 = scmp.eq.s32.totalorder %s20, 0
      %p105 = por %p103, %p104
      %p106 = scmp.ne.s32.totalorder %s92, %s93
      %p107 = scmp.eq.s32.totalorder %s21, 11
      %p108 = por %p106, %p107
      %p110 = scmp.ne.s32.totalorder %s93, %s109
      %p111 = scmp.eq.s32.totalorder %s21, 0
      %p112 = por %p110, %p111
      %s113 = ssub.s32 %s23, %s30
      %p114 = scmp.eq.s32.totalorder %s113, 0
      %s116 = sadd.s32 %s115, 1
      %s117 = scalar_select %p114, %s115, %s116
      %p120 = pneg %p114
      %p121 = scmp.eq.s32.totalorder %s15, 11
      %p122 = por %p120, %p121
      %p123 = scmp.ne.s32.totalorder %s115, %s118
      %p124 = scmp.eq.s32.totalorder %s15, 0
      %p125 = por %p123, %p124
      %p126 = scmp.ne.s32.totalorder %s115, %s118
      %p127 = scmp.eq.s32.totalorder %s20, 11
      %p128 = por %p126, %p127
      %p129 = scmp.ne.s32.totalorder %s118, %s119
      %p130 = scmp.eq.s32.totalorder %s20, 0
      %p131 = por %p129, %p130
      %p132 = scmp.ne.s32.totalorder %s118, %s119
      %p133 = scmp.eq.s32.totalorder %s21, 11
      %p134 = por %p132, %p133
      %p136 = scmp.ne.s32.totalorder %s119, %s135
      %p137 = scmp.eq.s32.totalorder %s21, 0
      %p138 = por %p136, %p137
      %s139 = ssub.s32 %s22, %s34
      %p140 = scmp.eq.s32.totalorder %s139, 0
      %s142 = sadd.s32 %s141, 1
      %s143 = scalar_select %p140, %s141, %s142
      %p146 = pneg %p140
      %p147 = scmp.eq.s32.totalorder %s15, 11
      %p148 = por %p146, %p147
      %p149 = scmp.ne.s32.totalorder %s141, %s144
      %p150 = scmp.eq.s32.totalorder %s15, 0
      %p151 = por %p149, %p150
      %p152 = scmp.ne.s32.totalorder %s141, %s144
      %p153 = scmp.eq.s32.totalorder %s20, 11
      %p154 = por %p152, %p153
      %p155 = scmp.ne.s32.totalorder %s144, %s145
      %p156 = scmp.eq.s32.totalorder %s20, 0
      %p157 = por %p155, %p156
      %p158 = scmp.ne.s32.totalorder %s144, %s145
      %p159 = scmp.eq.s32.totalorder %s21, 11
      %p160 = por %p158, %p159
      %p162 = scmp.ne.s32.totalorder %s145, %s161
      %p163 = scmp.eq.s32.totalorder %s21, 0
      %p164 = por %p162, %p163
      %s165 = ssub.s32 %s22, %s34
      %s166 = ssub.s32 %s23, %s30
      %s167 = sor.u32 %s165, %s166
      %p168 = scmp.eq.s32.totalorder %s167, 0
      %s170 = sadd.s32 %s169, 1
      %s171 = scalar_select %p168, %s169, %s170
      %p174 = pneg %p168
      %p175 = scmp.eq.s32.totalorder %s15, 11
      %p176 = por %p174, %p175
      %p177 = scmp.ne.s32.totalorder %s169, %s172
      %p178 = scmp.eq.s32.totalorder %s15, 0
      %p179 = por %p177, %p178
      %p180 = scmp.ne.s32.totalorder %s169, %s172
      %p181 = scmp.eq.s32.totalorder %s20, 11
      %p182 = por %p180, %p181
      %p183 = scmp.ne.s32.totalorder %s172, %s173
      %p184 = scmp.eq.s32.totalorder %s20, 0
      %p185 = por %p183, %p184
      %p186 = scmp.ne.s32.totalorder %s172, %s173
      %p187 = scmp.eq.s32.totalorder %s21, 11
      %p188 = por %p186, %p187
      %p190 = scmp.ne.s32.totalorder %s173, %s189
      %p191 = scmp.eq.s32.totalorder %s21, 0
      %p192 = por %p190, %p191
      %p193 = scmp.le.s32.totalorder 1, %s15
      %p194 = scmp.lt.s32.totalorder %s15, 13
      %p195 = pnand %p193, %p194
      %p196 = pneg %p195
      // Predicated region
      $region9: #{tpu_custom_call.1} parent=5 // pred_check
        _
      $region10: #{tpu_custom_call.1} parent=5 // pred_check_branch
        %198 = sbr.rel (%p195) target = $region12
      $region11: #{tpu_custom_call.1} parent=5 // pred_region
        %s199 = ssub.s32 %s15, 1
      $region12: #{tpu_custom_call.1} parent=5 // pred_fallthru
        _
      %p200 = scmp.lt.s32.totalorder %s15, 12
      // Predicated region
      $region13: #{tpu_custom_call.1} parent=5 // pred_check
        %p201 = pneg %p200
      $region14: #{tpu_custom_call.1} parent=5 // pred_check_branch
        %203 = sbr.rel (%p201) target = $region16
      $region15: #{tpu_custom_call.1} parent=5 // pred_region
        // Predicated region
        $region17: #{tpu_custom_call.1} parent=15 // pred_check
          %p204 = pneg %p47
        $region18: #{tpu_custom_call.1} parent=15 // pred_check_branch
          %206 = sbr.rel (%p204) target = $region20
        $region19: #{tpu_custom_call.1} parent=15 // pred_region
          %s207 = smul.u32 8, %s22
          %p208 = scmp.lt.s32.totalorder %s207, 31
          %s209 = scalar_select %p208, %s207, 31
          %s210 = smul.addr %s209, 8
          %s211 = scalar_lea.vmem %s0, %s210
          %s212 = smul.u32 8, %s22
        $region20: #{tpu_custom_call.1} parent=15 // pred_fallthru
          _
        // Predicated region
        $region21: #{tpu_custom_call.1} parent=15 // pred_check
          %p213 = pneg %p73
        $region22: #{tpu_custom_call.1} parent=15 // pred_check_branch
          %215 = sbr.rel (%p213) target = $region24
        $region23: #{tpu_custom_call.1} parent=15 // pred_region
          %p216 = scmp.lt.s32.totalorder %s23, 2
          %s217 = scalar_select %p216, %s23, 2
          %s218 = smul.addr %s217, 8
          %s219 = scalar_lea.vmem %s1, %s218
        $region24: #{tpu_custom_call.1} parent=15 // pred_fallthru
          _
        // Predicated region
        $region25: #{tpu_custom_call.1} parent=15 // pred_check
          %p220 = pneg %p99
        $region26: #{tpu_custom_call.1} parent=15 // pred_check_branch
          %222 = sbr.rel (%p220) target = $region28
        $region27: #{tpu_custom_call.1} parent=15 // pred_region
          %s223 = smul.u32 8, %s22
          %p224 = scmp.lt.s32.totalorder %s223, 31
          %s225 = scalar_select %p224, %s223, 31
          %s226 = smul.addr %s225, 8
          %s227 = scalar_lea.vmem %s2, %s226
          %s228 = smul.u32 8, %s22
        $region28: #{tpu_custom_call.1} parent=15 // pred_fallthru
          _
        // Predicated region
        $region29: #{tpu_custom_call.1} parent=15 // pred_check
          %p229 = pneg %p125
        $region30: #{tpu_custom_call.1} parent=15 // pred_check_branch
          %231 = sbr.rel (%p229) target = $region32
        $region31: #{tpu_custom_call.1} parent=15 // pred_region
          %p232 = scmp.lt.s32.totalorder %s23, 2
          %s233 = scalar_select %p232, %s23, 2
          %s234 = smul.addr %s233, 2
          %s235 = scalar_lea.vmem %s3, %s234
        $region32: #{tpu_custom_call.1} parent=15 // pred_fallthru
          _
      $region16: #{tpu_custom_call.1} parent=5 // pred_fallthru
        _
      %p236 = scmp.le.s32.totalorder 1, %s15
      %p237 = scmp.lt.s32.totalorder %s15, 13
      %p238 = pnand %p236, %p237
      %p239 = pneg %p238
      // Predicated region
      $region33: #{tpu_custom_call.1} parent=5 // pred_check
        _
      $region34: #{tpu_custom_call.1} parent=5 // pred_check_branch
        %241 = sbr.rel (%p238) target = $region36
      $region35: #{tpu_custom_call.1} parent=5 // pred_region
        %s242 = ssub.s32 %s15, 1
        %s243 = smul.u32 8, %s24
        %p244 = scmp.lt.s32.totalorder %s243, 31
        %s245 = scalar_select %p244, %s243, 31
        %s246 = smul.addr %s245, 8
        %s247 = scalar_lea.vmem %s0, %s246
        %p248 = pneg %p53
        %p249 = pneg %p50
        %p250 = scmp.lt.s32.totalorder %s25, 2
        %s251 = scalar_select %p250, %s25, 2
        %s252 = smul.addr %s251, 8
        %s253 = scalar_lea.vmem %s1, %s252
        %p254 = pneg %p79
        %p255 = pneg %p76
        %s256 = smul.u32 8, %s24
        %p257 = scmp.lt.s32.totalorder %s256, 31
        %s258 = scalar_select %p257, %s256, 31
        %s259 = smul.addr %s258, 8
        %s260 = scalar_lea.vmem %s2, %s259
        %p261 = pneg %p105
        %p262 = pneg %p102
        %p263 = scmp.lt.s32.totalorder %s25, 2
        %s264 = scalar_select %p263, %s25, 2
        %s265 = smul.addr %s264, 2
        %s266 = scalar_lea.vmem %s3, %s265
        %p267 = pneg %p131
        %p268 = pneg %p128
        %p269 = pneg %p157
        %p270 = pneg %p154
        %s271 = smul.u32 8, %s24
        %p272 = scmp.lt.s32.totalorder %s271, 31
        %s273 = scalar_select %p272, %s271, 31
        %s274 = smul.addr %s273, 8
        %s275 = scalar_lea.vmem %s4, %s274
        %p276 = pneg %p185
        %p277 = pneg %p182
        %s278 = sand.u32 %s172, 1
        %s279 = scalar_lea.sflag [#allocation3], %s278
        %s280 = sand.u32 %s172, 1
        %s281 = scalar_lea.vmem [#allocation2], %s280
        %s282 = smul.u32 8, %s24
        %p283 = scmp.lt.s32.totalorder %s282, 31
        %s284 = scalar_select %p283, %s282, 31
        %s285 = smul.addr %s284, 8
        %s286 = scalar_lea.vmem %s0, %s285
        %s287 = smul.u32 8, %s24
        %p288 = scmp.lt.s32.totalorder %s25, 2
        %s289 = scalar_select %p288, %s25, 2
        %s290 = smul.addr %s289, 8
        %s291 = scalar_lea.vmem %s1, %s290
        %s292 = smul.u32 8, %s24
        %p293 = scmp.lt.s32.totalorder %s292, 31
        %s294 = scalar_select %p293, %s292, 31
        %s295 = smul.addr %s294, 8
        %s296 = scalar_lea.vmem %s2, %s295
        %s297 = smul.u32 8, %s24
        %p298 = scmp.lt.s32.totalorder %s25, 2
        %s299 = scalar_select %p298, %s25, 2
        %s300 = smul.addr %s299, 2
        %s301 = scalar_lea.vmem %s3, %s300
        %s302 = smul.u32 8, %s24
        %p303 = scmp.lt.s32.totalorder %s302, 31
        %s304 = scalar_select %p303, %s302, 31
        %s305 = smul.addr %s304, 8
        %s306 = scalar_lea.vmem %s4, %s305
        %s307 = smul.u32 8, %s24
        %v308 = vld [vmem:[%s286] sm:$0xff]
        %v309 = vld [vmem:[%s286 + $0x8] sm:$0xff]
        %v310 = vld [vmem:[%s286 + $0x10] sm:$0xff]
        %v311 = vld [vmem:[%s286 + $0x18] sm:$0xff]
        %v312 = vld [vmem:[%s286 + $0x20] sm:$0xff]
        %v313 = vld [vmem:[%s286 + $0x28] sm:$0xff]
        %v314 = vld [vmem:[%s286 + $0x30] sm:$0xff]
        %v315 = vld [vmem:[%s286 + $0x38] sm:$0xff]
        %v316 = vld [vmem:[%s291] sm:$0x1f]
        %v317 = vld [vmem:[%s296] sm:$0xff]
        %v318 = vld [vmem:[%s296 + $0x8] sm:$0xff]
        %v319 = vld [vmem:[%s296 + $0x10] sm:$0xff]
        %v320 = vld [vmem:[%s296 + $0x18] sm:$0xff]
        %v321 = vld [vmem:[%s296 + $0x20] sm:$0xff]
        %v322 = vld [vmem:[%s296 + $0x28] sm:$0xff]
        %v323 = vld [vmem:[%s296 + $0x30] sm:$0xff]
        %v324 = vld [vmem:[%s296 + $0x38] sm:$0xff]
        %v325 = vld [vmem:[%s301] sm:$0x1]
        %v326 = vld [vmem:[%s301 + $0x1] sm:$0x1]
        %vm327 = vcmask 39936
        %v329 = vsel %vm327, %v308, 0
        %v332 = vsel %vm327, %v309, 0
        %v335 = vsel %vm327, %v310, 0
        %v338 = vsel %vm327, %v311, 0
        %v341 = vsel %vm327, %v312, 0
        %v344 = vsel %vm327, %v313, 0
        %v347 = vsel %vm327, %v314, 0
        %v350 = vsel %vm327, %v315, 0
        %vm352 = vcmask 1044480
        %v354 = vsel %vm352, %v316, 0
        %356 = vmatprep.subr.mxu0 0.0
        %357 = vmatpush1.msra.mxu0 0.0
        %358 = vmatprep.subr.mxu0 0.0
        %359 = vmatpush1.msra.mxu0 0.0
        %360 = vmatprep.subr.mxu0 0.0
        %361 = vmatpush1.msra.mxu0 0.0
        %362 = vmatprep.subr.mxu0 0.0
        %363 = vmatpush1.msra.mxu0 0.0
        %364 = vmatprep.subr.mxu0 0.0
        %365 = vmatpush1.msra.mxu0 0.0
        %366 = vmatprep.subr.mxu0 0.0
        %367 = vmatpush1.msra.mxu0 0.0
        %368 = vmatprep.subr.mxu0 0.0
        %369 = vmatpush1.msra.mxu0 0.0
        %370 = vmatprep.subr.mxu0 0.0
        %371 = vmatpush1.msra.mxu0 0.0
        %372 = vmatprep.subr.mxu0 0.0
        %373 = vmatpush1.msra.mxu0 0.0
        %374 = vmatprep.subr.mxu0 0.0
        %375 = vmatpush1.msra.mxu0 0.0
        %376 = vmatprep.subr.mxu0 0.0
        %377 = vmatpush1.msra.mxu0 0.0
        %378 = vmatprep.subr.mxu0 0.0
        %379 = vmatpush1.msra.mxu0 0.0
        %380 = vmatprep.subr.mxu0 0.0
        %381 = vmatpush1.msra.mxu0 0.0
        %382 = vmatprep.subr.mxu0 0.0
        %383 = vmatpush1.msra.mxu0 0.0
        %384 = vmatprep.subr.mxu0 0.0
        %385 = vmatpush1.msra.mxu0 0.0
        %386 = vmatprep.subr.mxu0 0.0
        %387 = vmatpush1.msra.mxu0 %v354
        %388 = vmatprep.subr.mxu0 0.0
        %389 = vmatpush2.msra.mxu0 0.0
        %390 = vmatprep.subr.mxu0 0.0
        %391 = vmatpush2.msra.mxu0 0.0
        %392 = vmatprep.subr.mxu0 0.0
        %393 = vmatpush2.msra.mxu0 0.0
        %394 = vmatprep.subr.mxu0 0.0
        %395 = vmatpush2.msra.mxu0 0.0
        %396 = vmatprep.subr.mxu0 0.0
        %397 = vmatpush2.msra.mxu0 0.0
        %398 = vmatprep.subr.mxu0 0.0
        %399 = vmatpush2.msra.mxu0 0.0
        %400 = vmatprep.subr.mxu0 0.0
        %401 = vmatpush2.msra.mxu0 0.0
        %402 = vmatprep.subr.mxu0 0.0
        %403 = vmatpush2.msra.mxu0 0.0
        %404 = vmatprep.subr.mxu0 0.0
        %405 = vmatpush2.msra.mxu0 0.0
        %406 = vmatprep.subr.mxu0 0.0
        %407 = vmatpush2.msra.mxu0 0.0
        %408 = vmatprep.subr.mxu0 0.0
        %409 = vmatpush2.msra.mxu0 0.0
        %410 = vmatprep.subr.mxu0 0.0
        %411 = vmatpush2.msra.mxu0 0.0
        %412 = vmatprep.subr.mxu0 0.0
        %413 = vmatpush2.msra.mxu0 0.0
        %414 = vmatprep.subr.mxu0 0.0
        %415 = vmatpush2.msra.mxu0 0.0
        %416 = vmatprep.subr.mxu0 0.0
        %417 = vmatpush2.msra.mxu0 0.0
        %418 = vmatprep.subr.mxu0 0.0
        %419 = vmatpush2.msra.mxu0 0.0
        %420 = vmatprep.mubr.f32.mxu0 0.0
        %421 = vmatmul.mubr.f32.gmra.mxu0 %v329
        %v422 = vpop.f32.mrf.mxu0
        %v423 = vadd.f32 0.0, %v422
        %v424 = vpop.f32.mrf.mxu0
        %425 = vmatprep.mubr.f32.mxu0 0.0
        %426 = vmatmul.mubr.f32.gmra.mxu0 %v332
        %v427 = vpop.f32.mrf.mxu0
        %v428 = vadd.f32 0.0, %v427
        %v429 = vpop.f32.mrf.mxu0
        %430 = vmatprep.mubr.f32.mxu0 0.0
        %431 = vmatmul.mubr.f32.gmra.mxu0 %v335
        %v432 = vpop.f32.mrf.mxu0
        %v433 = vadd.f32 0.0, %v432
        %v434 = vpop.f32.mrf.mxu0
        %435 = vmatprep.mubr.f32.mxu0 0.0
        %436 = vmatmul.mubr.f32.gmra.mxu0 %v338
        %v437 = vpop.f32.mrf.mxu0
        %v438 = vadd.f32 0.0, %v437
        %v439 = vpop.f32.mrf.mxu0
        %440 = vmatprep.mubr.f32.mxu0 0.0
        %441 = vmatmul.mubr.f32.gmra.mxu0 %v341
        %v442 = vpop.f32.mrf.mxu0
        %v443 = vadd.f32 0.0, %v442
        %v444 = vpop.f32.mrf.mxu0
        %445 = vmatprep.mubr.f32.mxu0 0.0
        %446 = vmatmul.mubr.f32.gmra.mxu0 %v344
        %v447 = vpop.f32.mrf.mxu0
        %v448 = vadd.f32 0.0, %v447
        %v449 = vpop.f32.mrf.mxu0
        %450 = vmatprep.mubr.f32.mxu0 0.0
        %451 = vmatmul.mubr.f32.gmra.mxu0 %v347
        %v452 = vpop.f32.mrf.mxu0
        %v453 = vadd.f32 0.0, %v452
        %v454 = vpop.f32.mrf.mxu0
        %455 = vmatprep.mubr.f32.mxu0 0.0
        %456 = vmatmul.mubr.f32.gmra.mxu0 %v350
        %v457 = vpop.f32.mrf.mxu0
        %v458 = vadd.f32 0.0, %v457
        %v459 = vpop.f32.mrf.mxu0
        %460 = vdwg.mxu0
        %462 = vset.pattern.permute.xlu0 0
        %463 = vperm.xlu0 %462, %v317
        %v464 = vpop.permute.xlu0 %463
        %467 = vset.pattern.permute.xlu0 0
        %468 = vperm.xlu0 %467, %v318
        %v469 = vpop.permute.xlu0 %468
        %472 = vset.pattern.permute.xlu0 0
        %473 = vperm.xlu0 %472, %v319
        %v474 = vpop.permute.xlu0 %473
        %477 = vset.pattern.permute.xlu0 0
        %478 = vperm.xlu0 %477, %v320
        %v479 = vpop.permute.xlu0 %478
        %482 = vset.pattern.permute.xlu0 0
        %483 = vperm.xlu0 %482, %v321
        %v484 = vpop.permute.xlu0 %483
        %487 = vset.pattern.permute.xlu0 0
        %488 = vperm.xlu0 %487, %v322
        %v489 = vpop.permute.xlu0 %488
        %492 = vset.pattern.permute.xlu0 0
        %493 = vperm.xlu0 %492, %v323
        %v494 = vpop.permute.xlu0 %493
        %497 = vset.pattern.permute.xlu0 0
        %498 = vperm.xlu0 %497, %v324
        %v499 = vpop.permute.xlu0 %498
        %v501 = vlaneseq
        %v502 = vshrl.u32 %v501, 7
        %v503 = vsub.s32 0, %v502
        %v504 = vrot.slane %v325, %v503
        %v505 = vadd.f32 %v464, %v504
        %v506 = vadd.f32 %v469, %v504
        %v507 = vadd.f32 %v474, %v504
        %v508 = vadd.f32 %v479, %v504
        %v509 = vadd.f32 %v484, %v504
        %v510 = vadd.f32 %v489, %v504
        %v511 = vadd.f32 %v494, %v504
        %v512 = vadd.f32 %v499, %v504
        %v513 = vsub.f32 %v505, %v423
        %v514 = vsub.f32 %v506, %v428
        %v515 = vsub.f32 %v507, %v433
        %v516 = vsub.f32 %v508, %v438
        %v517 = vsub.f32 %v509, %v443
        %v518 = vsub.f32 %v510, %v448
        %v519 = vsub.f32 %v511, %v453
        %v520 = vsub.f32 %v512, %v458
        %521 = vset.pattern.permute.xlu0 1
        %522 = vperm.xlu0 %521, %v317
        %v523 = vpop.permute.xlu0 %522
        %525 = vset.pattern.permute.xlu0 1
        %526 = vperm.xlu0 %525, %v318
        %v527 = vpop.permute.xlu0 %526
        %529 = vset.pattern.permute.xlu0 1
        %530 = vperm.xlu0 %529, %v319
        %v531 = vpop.permute.xlu0 %530
        %533 = vset.pattern.permute.xlu0 1
        %534 = vperm.xlu0 %533, %v320
        %v535 = vpop.permute.xlu0 %534
        %537 = vset.pattern.permute.xlu0 1
        %538 = vperm.xlu0 %537, %v321
        %v539 = vpop.permute.xlu0 %538
        %541 = vset.pattern.permute.xlu0 1
        %542 = vperm.xlu0 %541, %v322
        %v543 = vpop.permute.xlu0 %542
        %545 = vset.pattern.permute.xlu0 1
        %546 = vperm.xlu0 %545, %v323
        %v547 = vpop.permute.xlu0 %546
        %549 = vset.pattern.permute.xlu0 1
        %550 = vperm.xlu0 %549, %v324
        %v551 = vpop.permute.xlu0 %550
        %v553 = vmul.f32 %v513, %v523
        %v554 = vmul.f32 %v514, %v527
        %v555 = vmul.f32 %v515, %v531
        %v556 = vmul.f32 %v516, %v535
        %v557 = vmul.f32 %v517, %v539
        %v558 = vmul.f32 %v518, %v543
        %v559 = vmul.f32 %v519, %v547
        %v560 = vmul.f32 %v520, %v551
        %v561 = vlaneseq
        %v562 = vshrl.u32 %v561, 7
        %v563 = vsub.s32 0, %v562
        %v564 = vrot.slane %v326, %v563
        %v565 = vmul.f32 %v553, %v564
        %v566 = vmul.f32 %v554, %v564
        %v567 = vmul.f32 %v555, %v564
        %v568 = vmul.f32 %v556, %v564
        %v569 = vmul.f32 %v557, %v564
        %v570 = vmul.f32 %v558, %v564
        %v571 = vmul.f32 %v559, %v564
        %v572 = vmul.f32 %v560, %v564
        %573 = vmin.xlane.f32.xlu0 %v565
        %v574 = vpop.xlane.xlu0 %573
        %575 = vmin.xlane.f32.xlu0 %v566
        %v576 = vpop.xlane.xlu0 %575
        %577 = vmin.xlane.f32.xlu0 %v567
        %v578 = vpop.xlane.xlu0 %577
        %579 = vmin.xlane.f32.xlu0 %v568
        %v580 = vpop.xlane.xlu0 %579
        %581 = vmin.xlane.f32.xlu0 %v569
        %v582 = vpop.xlane.xlu0 %581
        %583 = vmin.xlane.f32.xlu0 %v570
        %v584 = vpop.xlane.xlu0 %583
        %585 = vmin.xlane.f32.xlu0 %v571
        %v586 = vpop.xlane.xlu0 %585
        %587 = vmin.xlane.f32.xlu0 %v572
        %v588 = vpop.xlane.xlu0 %587
        %p589 = scmp.eq.s32.totalorder %s25, 0
        // Predicated region
        $region37: #{tpu_custom_call.1} parent=35 // pred_check
          %p590 = pneg %p589
        $region38: #{tpu_custom_call.1} parent=35 // pred_check_branch
          %592 = sbr.rel (%p590) target = $region40
        $region39: #{tpu_custom_call.1} parent=35 // pred_region
          %vm593 = vcmask 7168
          %594 = vst.msk [vmem:[%s306] sm:$0xff] %vm593, %v574
          %595 = vst.msk [vmem:[%s306 + $0x8] sm:$0xff] %vm593, %v576
          %596 = vst.msk [vmem:[%s306 + $0x10] sm:$0xff] %vm593, %v578
          %597 = vst.msk [vmem:[%s306 + $0x18] sm:$0xff] %vm593, %v580
          %598 = vst.msk [vmem:[%s306 + $0x20] sm:$0xff] %vm593, %v582
          %599 = vst.msk [vmem:[%s306 + $0x28] sm:$0xff] %vm593, %v584
          %600 = vst.msk [vmem:[%s306 + $0x30] sm:$0xff] %vm593, %v586
          %601 = vst.msk [vmem:[%s306 + $0x38] sm:$0xff] %vm593, %v588
        $region40: #{tpu_custom_call.1} parent=35 // pred_fallthru
          _
        %p602 = scmp.gt.s32.totalorder %s25, 0
        // Predicated region
        $region41: #{tpu_custom_call.1} parent=35 // pred_check
          %p603 = pneg %p602
        $region42: #{tpu_custom_call.1} parent=35 // pred_check_branch
          %605 = sbr.rel (%p603) target = $region44
        $region43: #{tpu_custom_call.1} parent=35 // pred_region
          %v606 = vld [vmem:[%s306] sm:$0xff]
          %v607 = vld [vmem:[%s306 + $0x8] sm:$0xff]
          %v608 = vld [vmem:[%s306 + $0x10] sm:$0xff]
          %v609 = vld [vmem:[%s306 + $0x18] sm:$0xff]
          %v610 = vld [vmem:[%s306 + $0x20] sm:$0xff]
          %v611 = vld [vmem:[%s306 + $0x28] sm:$0xff]
          %v612 = vld [vmem:[%s306 + $0x30] sm:$0xff]
          %v613 = vld [vmem:[%s306 + $0x38] sm:$0xff]
          %v614 = vmin.f32 %v606, %v574
          %v615 = vmin.f32 %v607, %v576
          %v616 = vmin.f32 %v608, %v578
          %v617 = vmin.f32 %v609, %v580
          %v618 = vmin.f32 %v610, %v582
          %v619 = vmin.f32 %v611, %v584
          %v620 = vmin.f32 %v612, %v586
          %v621 = vmin.f32 %v613, %v588
          %vm622 = vcmask 7168
          %623 = vst.msk [vmem:[%s306] sm:$0xff] %vm622, %v614
          %624 = vst.msk [vmem:[%s306 + $0x8] sm:$0xff] %vm622, %v615
          %625 = vst.msk [vmem:[%s306 + $0x10] sm:$0xff] %vm622, %v616
          %626 = vst.msk [vmem:[%s306 + $0x18] sm:$0xff] %vm622, %v617
          %627 = vst.msk [vmem:[%s306 + $0x20] sm:$0xff] %vm622, %v618
          %628 = vst.msk [vmem:[%s306 + $0x28] sm:$0xff] %vm622, %v619
          %629 = vst.msk [vmem:[%s306 + $0x30] sm:$0xff] %vm622, %v620
          %630 = vst.msk [vmem:[%s306 + $0x38] sm:$0xff] %vm622, %v621
        $region44: #{tpu_custom_call.1} parent=35 // pred_fallthru
          _
        %v631 = vmin.f32 %v565, %v569
        %v632 = vmin.f32 %v566, %v570
        %v633 = vmin.f32 %v567, %v571
        %v634 = vmin.f32 %v568, %v572
        %v635 = vmin.f32 %v631, %v632
        %v636 = vmin.f32 %v633, %v634
        %v637 = vmin.f32 %v635, %v636
        %v638 = vrot.slane %v637, 4
        %v639 = vmin.f32 %v637, %v638
        %v640 = vrot.slane %v639, 2
        %v641 = vmin.f32 %v639, %v640
        %v642 = vrot.slane %v641, 1
        %v643 = vmin.f32 %v641, %v642
        %644 = vst [vmem:[%s281] sm:$0x1] %v643
        %s645 = smul.u32 8, %s24
        %p646 = scmp.lt.s32.totalorder %s645, 31
        %s647 = scalar_select %p646, %s645, 31
        %s648 = smul.addr %s647, 8
        %s649 = scalar_lea.vmem %s4, %s648
        %s650 = sand.u32 %s172, 1
        %s651 = scalar_lea.sflag [#allocation3], %s650
        %s652 = sand.u32 %s172, 1
        %s653 = scalar_lea.vmem [#allocation2], %s652
        // Predicated region
        $region45: #{tpu_custom_call.1} parent=35 // pred_check
          %p654 = pneg %p154
        $region46: #{tpu_custom_call.1} parent=35 // pred_check_branch
          %656 = sbr.rel (%p654) target = $region48
        $region47: #{tpu_custom_call.1} parent=35 // pred_region
          %s657 = smul.u32 8, %s24
        $region48: #{tpu_custom_call.1} parent=35 // pred_fallthru
          _
        // Predicated region
        $region49: #{tpu_custom_call.1} parent=35 // pred_check
          %p658 = pneg %p182
        $region50: #{tpu_custom_call.1} parent=35 // pred_check_branch
          %660 = sbr.rel (%p658) target = $region52
        $region51: #{tpu_custom_call.1} parent=35 // pred_region
          %s662 = ssub.s32 16, 16
          %663 = vsyncadd %s651, %s662
          %s664 = smul.addr %s24, 3
          %s665 = sadd.s32 %s25, %s664
          %s666 = smul.addr %s665, 16
          %s667 = scalar_lea.hbm %s5, %s666
          %s669 = sshll.u32 %s653, 4
          %s670 = int_to_ptr.vmem [resolvable:$true] %s669
          %672 = dma.vmem_to_hbm [thread:$0]  %s670, 16, %s667, %s651
        $region52: #{tpu_custom_call.1} parent=35 // pred_fallthru
          _
      $region36: #{tpu_custom_call.1} parent=5 // pred_fallthru
        _
      %p673 = scmp.le.s32.totalorder 2, %s15
      // Predicated region
      $region53: #{tpu_custom_call.1} parent=5 // pred_check
        %p674 = pneg %p673
      $region54: #{tpu_custom_call.1} parent=5 // pred_check_branch
        %676 = sbr.rel (%p674) target = $region56
      $region55: #{tpu_custom_call.1} parent=5 // pred_region
        %s677 = ssub.s32 %s15, 2
        // Predicated region
        $region57: #{tpu_custom_call.1} parent=55 // pred_check
          %p678 = pneg %p160
        $region58: #{tpu_custom_call.1} parent=55 // pred_check_branch
          %680 = sbr.rel (%p678) target = $region60
        $region59: #{tpu_custom_call.1} parent=55 // pred_region
          %s681 = smul.u32 8, %s26
          %p682 = scmp.lt.s32.totalorder %s681, 31
          %s683 = scalar_select %p682, %s681, 31
          %s684 = smul.addr %s683, 8
          %s685 = scalar_lea.vmem %s4, %s684
        $region60: #{tpu_custom_call.1} parent=55 // pred_fallthru
          _
        // Predicated region
        $region61: #{tpu_custom_call.1} parent=55 // pred_check
          %p686 = pneg %p188
        $region62: #{tpu_custom_call.1} parent=55 // pred_check_branch
          %688 = sbr.rel (%p686) target = $region64
        $region63: #{tpu_custom_call.1} parent=55 // pred_region
          %s689 = sand.u32 %s173, 1
          %s690 = scalar_lea.sflag [#allocation3], %s689
          %s691 = sand.u32 %s173, 1
          %s692 = scalar_lea.vmem [#allocation2], %s691
          %693 = dma.done %s690, 16
        $region64: #{tpu_custom_call.1} parent=55 // pred_fallthru
          _
      $region56: #{tpu_custom_call.1} parent=5 // pred_fallthru
        _
    $region6: #{tpu_custom_call.1} parent=1 // loop_footer
      %s19 = sadd.s32 1, %s15
    $region7: #{tpu_custom_call.1} parent=1 // loop_footer_branch
      %14 = sbr.rel target = $region3
    $region8: #{tpu_custom_call.1} parent=1 // loop_exit
      _
    %694 = vsyncpa [#allocation3], 1
    %s695 = scalar_lea.sflag [#allocation3], 1
    %696 = vsyncpa %s695, 1

</llo_original>
